<compile_context>
chip_gen: v7x
topology: tpu7x:2x2x1
jax: 0.10.0
libtpu: 0.0.40
codegen_flags: <defaults>
</compile_context>

<pallas_src>
import math

import jax
import jax.numpy as jnp
from jax.experimental import pallas as pl
from jax.experimental.pallas import tpu as pltpu


# ----------------------------------------------------------------------------
# Pallas kernel: transposed MLP over a slab of TILE_N pixels (pixels on lanes).
# ----------------------------------------------------------------------------
def _ppe_mlp_kernel(hw_ref, dimt_ref,
                    w1_ref, b1_ref, w2_ref, b2_ref, w3_ref, b3_ref, o_ref):
    f32 = jnp.float32
    bf16 = jnp.bfloat16

    dim_t = dimt_ref[...]                       # (F, 1)        f32
    ph = dim_t * hw_ref[0:1, :]                 # (F, TILE_N)   row embedding * freqs
    pw = dim_t * hw_ref[1:2, :]                 # (F, TILE_N)   col embedding * freqs

    # Layer 1 as a single MXU push: stack the four trig blocks along sublanes
    # (each is an exact (F, TILE_N) f32 tile when F is a multiple of 8) and
    # cast to bf16 once.  pos == [sin ph; cos ph; sin pw; cos pw].
    pos = jnp.concatenate(
        [jnp.sin(ph), jnp.cos(ph), jnp.sin(pw), jnp.cos(pw)], axis=0).astype(bf16)

    h1 = jnp.dot(w1_ref[...], pos, preferred_element_type=f32) + b1_ref[...]
    h1 = h1.astype(bf16)
    h1 = h1 * jax.nn.sigmoid(h1)                # bf16 SiLU (bf16 EUP on v6e/v7x)

    h2 = jnp.dot(w2_ref[...], h1, preferred_element_type=f32) + b2_ref[...]
    h2 = h2.astype(bf16)
    h2 = h2 * jax.nn.sigmoid(h2)

    out = jnp.dot(w3_ref[...], h2, preferred_element_type=f32) + b3_ref[...]
    o_ref[...] = out.astype(o_ref.dtype)        # lane-dense (out_channel, TILE_N) store


# ----------------------------------------------------------------------------
# Tiling helper
# ----------------------------------------------------------------------------
def _choose_tile_n(N, max_tile=8192):
    """Largest lane-dense TILE_N <= max_tile that divides N, preferring a grid
    of >= 2 steps (megacore sharding + pipelining). Single-block fallback when
    N is not a multiple of 128."""
    if N % 128 != 0:
        # TODO(synk): pad N to a lane multiple + masked tail instead of one block.
        return N
    single_block = None
    t = (min(max_tile, N) // 128) * 128
    while t >= 128:
        if N % t == 0:
            if N // t >= 2:
                return t
            single_block = t
        t -= 128
    return single_block if single_block is not None else N


# ----------------------------------------------------------------------------
# Wrapper
# ----------------------------------------------------------------------------
def ppe_mlp_forward(x, params, *, freq_num, out_channel, freq_max=None,
                    tile_n=None, out_dtype=jnp.float32):
    """x: NCHW array (only H, W are used). Returns (1, out_channel, H, W)."""
    H, W = int(x.shape[-2]), int(x.shape[-1])
    N = H * W
    minlen = float(min(H, W))
    fm = float(freq_max) if freq_max is not None else minlen / 2.0
    twopi = 2.0 * math.pi
    F = freq_num
    C = out_channel

    w1, b1, w2, b2, w3, b3 = params          # weights (in, out) f32; biases (1, out)

    # --- tiny XLA-side precompute (2 floats / pixel + F freqs) ---------------
    rows = (jnp.arange(H, dtype=jnp.float32) + 0.5 - H / 2.0) / minlen * twopi
    cols = (jnp.arange(W, dtype=jnp.float32) + 0.5 - W / 2.0) / minlen * twopi
    hw = jnp.stack([jnp.repeat(rows, W), jnp.tile(cols, H)], axis=0)     # (2, N)
    dim_t = (fm ** jnp.linspace(0.0, 1.0, F, dtype=jnp.float32)).reshape(F, 1)

    # --- weights: transpose + bf16-cast once --------------------------------
    bf16 = jnp.bfloat16
    w1t = jnp.transpose(w1).astype(bf16)             # (hidden, 4F) single layer-1 operand
    w2t = jnp.transpose(w2).astype(bf16)             # (hidden, hidden)
    w3t = jnp.transpose(w3).astype(bf16)             # (out, hidden)
    b1t = jnp.transpose(b1).astype(jnp.float32)      # (hidden, 1)
    b2t = jnp.transpose(b2).astype(jnp.float32)
    b3t = jnp.transpose(b3).astype(jnp.float32)      # (out, 1)

    if tile_n is None:
        tile_n = _choose_tile_n(N)
    assert N % tile_n == 0 and (tile_n % 128 == 0 or tile_n == N), (N, tile_n)
    grid = (N // tile_n,)

    const = lambda a: pl.BlockSpec(a.shape, lambda i: (0,) * a.ndim)       # resident

    hidden = w1.shape[1]
    flops = 2 * N * (4 * F * hidden + hidden * hidden + hidden * C)
    transcendentals = N * (4 * F + hidden + C)            # sin/cos + two sigmoids
    bytes_accessed = (N * C * jnp.dtype(out_dtype).itemsize          # output
                      + 2 * N * 4                                    # hw embeddings
                      + (4 * F * hidden + hidden * hidden + hidden * C) * 2)  # bf16 weights
    cost = pl.CostEstimate(flops=flops, transcendentals=transcendentals,
                           bytes_accessed=bytes_accessed)

    out_t = pl.pallas_call(
        _ppe_mlp_kernel,
        out_shape=jax.ShapeDtypeStruct((C, N), out_dtype),
        grid=grid,
        in_specs=[pl.BlockSpec((2, tile_n), lambda i: (0, i)),   # packed h/w embeddings
                  const(dim_t),
                  const(w1t), const(b1t),
                  const(w2t), const(b2t),
                  const(w3t), const(b3t)],
        out_specs=pl.BlockSpec((C, tile_n), lambda i: (0, i)),
        compiler_params=pltpu.CompilerParams(
            dimension_semantics=("parallel",),
            vmem_limit_bytes=48 * 1024 * 1024),      # headroom; safe on v7x's 64 MiB
        cost_estimate=cost,
    )(hw, dim_t, w1t, b1t, w2t, b2t, w3t, b3t)

    # (C, N) row-major == (C, H, W) row-major: NCHW permute is a free reshape.
    return out_t.reshape(1, C, H, W)


# ----------------------------------------------------------------------------
# Deterministic parameter init (xavier-normal weights, zero bias)
# ----------------------------------------------------------------------------
def init_params(key, freq_num, out_channel, mlp_layer=3):
    params = []
    in_channel = freq_num * 4
    for _ in range(mlp_layer):
        key, sub = jax.random.split(key)
        std = math.sqrt(2.0 / (in_channel + out_channel))
        w = std * jax.random.normal(sub, (in_channel, out_channel), jnp.float32)
        b = jnp.zeros((1, out_channel), jnp.float32)
        params += [w, b]
        in_channel = out_channel
    return tuple(params)


# ----------------------------------------------------------------------------
# Reference (mirrors the PyTorch forward in eval mode; matmul inputs are cast
# to bf16 like the kernel's MXU-native path, accumulation in f32).
# ----------------------------------------------------------------------------
def ppe_mlp_reference(x, params, *, freq_num, out_channel, freq_max=None):
    H, W = int(x.shape[-2]), int(x.shape[-1])
    minlen = float(min(H, W))
    twopi = 2.0 * math.pi
    fm = float(freq_max) if freq_max is not None else minlen / 2.0

    h_embed, w_embed = jnp.meshgrid(jnp.arange(H, dtype=jnp.float32),
                                    jnp.arange(W, dtype=jnp.float32), indexing="ij")
    h_embed = (h_embed + 0.5 - H / 2.0) / minlen * twopi
    w_embed = (w_embed + 0.5 - W / 2.0) / minlen * twopi
    dim_t = fm ** jnp.linspace(0.0, 1.0, freq_num, dtype=jnp.float32)
    pos_h = h_embed[:, :, None] * dim_t
    pos_w = w_embed[:, :, None] * dim_t
    pos = jnp.concatenate(
        [jnp.sin(pos_h), jnp.cos(pos_h), jnp.sin(pos_w), jnp.cos(pos_w)], axis=-1)

    w1, b1, w2, b2, w3, b3 = params
    bf16 = jnp.bfloat16

    def mm(a, w):  # MXU-equivalent precision (bf16 inputs, f32 accumulate)
        return jnp.dot(a.astype(bf16), w.astype(bf16), preferred_element_type=jnp.float32)

    h1 = mm(pos, w1) + b1[0]
    h1 = h1 * jax.nn.sigmoid(h1)
    h2 = mm(h1, w2) + b2[0]
    h2 = h2 * jax.nn.sigmoid(h2)
    out = mm(h2, w3) + b3[0]
    return jnp.transpose(out, (2, 0, 1))[None]


if __name__ == "__main__":
    FREQ_NUM = 8          # -> in_channel = 32
    OUT_CHANNEL = 32
    B, C_IN, H, W = 2, 4, 16, 16

    key = jax.random.PRNGKey(0)
    kx, kp = jax.random.split(key)
    x = jax.random.normal(kx, (B, C_IN, H, W), jnp.float32)     # NCHW, like PyTorch
    params = init_params(kp, FREQ_NUM, OUT_CHANNEL, mlp_layer=3)

    # Multi-step grid (tile_n=128 -> 2 pixel slabs) at the small test size.
    out = ppe_mlp_forward(x, params, freq_num=FREQ_NUM, out_channel=OUT_CHANNEL,
                          tile_n=128)
    out = jax.block_until_ready(out)
    ref = ppe_mlp_reference(x, params, freq_num=FREQ_NUM, out_channel=OUT_CHANNEL)
    assert out.shape == (1, OUT_CHANNEL, H, W), out.shape
    # Slightly looser tolerance than before: SiLU is now evaluated in bf16.
    assert jnp.allclose(out, ref, atol=2e-2, rtol=2e-2), \
        float(jnp.max(jnp.abs(out - ref)))

    # Auto-tiled path with a non-square image (N=512 -> tile 256, grid of 2).
    x2 = jax.random.normal(kx, (1, C_IN, 32, 16), jnp.float32)
    out2 = jax.block_until_ready(
        ppe_mlp_forward(x2, params, freq_num=FREQ_NUM, out_channel=OUT_CHANNEL))
    ref2 = ppe_mlp_reference(x2, params, freq_num=FREQ_NUM, out_channel=OUT_CHANNEL)
    assert out2.shape == (1, OUT_CHANNEL, 32, 16), out2.shape
    assert jnp.allclose(out2, ref2, atol=2e-2, rtol=2e-2), \
        float(jnp.max(jnp.abs(out2 - ref2)))

    print("KERNEL_OK")
</pallas_src>

<mosaic_0001>
module attributes {stable_mosaic.version = 11 : i64} {
  func.func @_ppe_mlp_kernel(%arg0: i32, %arg1: memref<2x128xf32, #tpu.memory_space<vmem>>, %arg2: memref<8x1xf32, #tpu.memory_space<vmem>>, %arg3: memref<32x32xbf16, #tpu.memory_space<vmem>>, %arg4: memref<32x1xf32, #tpu.memory_space<vmem>>, %arg5: memref<32x32xbf16, #tpu.memory_space<vmem>>, %arg6: memref<32x1xf32, #tpu.memory_space<vmem>>, %arg7: memref<32x32xbf16, #tpu.memory_space<vmem>>, %arg8: memref<32x1xf32, #tpu.memory_space<vmem>>, %arg9: memref<32x128xf32, #tpu.memory_space<vmem>>) attributes {dimension_semantics = [#tpu.dimension_semantics<parallel>], iteration_bounds = array<i64: 2>, scalar_prefetch = 0 : i64, scratch_operands = 0 : i64, tpu.core_type = #tpu.core_type<tc>, window_params = [{transform_indices = @transform_0, window_bounds = array<i64: 2, 128>}, {pipeline_mode = #tpu.pipeline_mode<synchronous>, transform_indices = @transform_1, window_bounds = array<i64: 8, 1>}, {pipeline_mode = #tpu.pipeline_mode<synchronous>, transform_indices = @transform_2, window_bounds = array<i64: 32, 32>}, {pipeline_mode = #tpu.pipeline_mode<synchronous>, transform_indices = @transform_3, window_bounds = array<i64: 32, 1>}, {pipeline_mode = #tpu.pipeline_mode<synchronous>, transform_indices = @transform_4, window_bounds = array<i64: 32, 32>}, {pipeline_mode = #tpu.pipeline_mode<synchronous>, transform_indices = @transform_5, window_bounds = array<i64: 32, 1>}, {pipeline_mode = #tpu.pipeline_mode<synchronous>, transform_indices = @transform_6, window_bounds = array<i64: 32, 32>}, {pipeline_mode = #tpu.pipeline_mode<synchronous>, transform_indices = @transform_7, window_bounds = array<i64: 32, 1>}, {transform_indices = @transform_8, window_bounds = array<i64: 32, 128>}]} {
    %c0 = arith.constant 0 : index
    %c0_0 = arith.constant 0 : index
    %0 = vector.load %arg2[%c0, %c0_0] : memref<8x1xf32, #tpu.memory_space<vmem>>, vector<8x1xf32>
    %c0_1 = arith.constant 0 : index
    %c0_2 = arith.constant 0 : index
    %1 = vector.load %arg1[%c0_1, %c0_2] : memref<2x128xf32, #tpu.memory_space<vmem>>, vector<1x128xf32>
    %2 = vector.broadcast %0 : vector<8x1xf32> to vector<8x128xf32>
    %3 = vector.broadcast %1 : vector<1x128xf32> to vector<8x128xf32>
    %4 = arith.mulf %2, %3 : vector<8x128xf32>
    %c1 = arith.constant 1 : index
    %c0_3 = arith.constant 0 : index
    %5 = vector.load %arg1[%c1, %c0_3] : memref<2x128xf32, #tpu.memory_space<vmem>>, vector<1x128xf32>
    %6 = vector.broadcast %0 : vector<8x1xf32> to vector<8x128xf32>
    %7 = vector.broadcast %5 : vector<1x128xf32> to vector<8x128xf32>
    %8 = arith.mulf %6, %7 : vector<8x128xf32>
    %9 = math.sin %4 : vector<8x128xf32>
    %10 = math.cos %4 : vector<8x128xf32>
    %11 = math.sin %8 : vector<8x128xf32>
    %12 = math.cos %8 : vector<8x128xf32>
    %13 = tpu.concatenate %9, %10, %11, %12 in 0 : vector<8x128xf32>, vector<8x128xf32>, vector<8x128xf32>, vector<8x128xf32> -> vector<32x128xf32>
    %14 = arith.truncf %13 : vector<32x128xf32> to vector<32x128xbf16>
    %c0_4 = arith.constant 0 : index
    %c0_5 = arith.constant 0 : index
    %15 = vector.load %arg3[%c0_4, %c0_5] : memref<32x32xbf16, #tpu.memory_space<vmem>>, vector<32x32xbf16>
    %cst = arith.constant dense<0.000000e+00> : vector<32x128xf32>
    %16 = tpu.matmul %15, %14, %cst {dimension_numbers = #tpu.dot_dimension_numbers<[1], [0], [0], [1], [0, 0, 1, 1], [], []>} : vector<32x32xbf16>, vector<32x128xbf16>, vector<32x128xf32> -> vector<32x128xf32>
    %c0_6 = arith.constant 0 : index
    %c0_7 = arith.constant 0 : index
    %17 = vector.load %arg4[%c0_6, %c0_7] : memref<32x1xf32, #tpu.memory_space<vmem>>, vector<32x1xf32>
    %18 = vector.broadcast %17 : vector<32x1xf32> to vector<32x128xf32>
    %19 = arith.addf %16, %18 : vector<32x128xf32>
    %20 = arith.truncf %19 : vector<32x128xf32> to vector<32x128xbf16>
    %21 = arith.negf %20 : vector<32x128xbf16>
    %22 = math.exp %21 : vector<32x128xbf16>
    %cst_8 = arith.constant 1.000000e+00 : bf16
    %23 = vector.broadcast %cst_8 : bf16 to vector<32x128xbf16>
    %24 = arith.addf %23, %22 : vector<32x128xbf16>
    %25 = arith.divf %23, %24 : vector<32x128xbf16>
    %26 = arith.mulf %20, %25 : vector<32x128xbf16>
    %c0_9 = arith.constant 0 : index
    %c0_10 = arith.constant 0 : index
    %27 = vector.load %arg5[%c0_9, %c0_10] : memref<32x32xbf16, #tpu.memory_space<vmem>>, vector<32x32xbf16>
    %cst_11 = arith.constant dense<0.000000e+00> : vector<32x128xf32>
    %28 = tpu.matmul %27, %26, %cst_11 {dimension_numbers = #tpu.dot_dimension_numbers<[1], [0], [0], [1], [0, 0, 1, 1], [], []>} : vector<32x32xbf16>, vector<32x128xbf16>, vector<32x128xf32> -> vector<32x128xf32>
    %c0_12 = arith.constant 0 : index
    %c0_13 = arith.constant 0 : index
    %29 = vector.load %arg6[%c0_12, %c0_13] : memref<32x1xf32, #tpu.memory_space<vmem>>, vector<32x1xf32>
    %30 = vector.broadcast %29 : vector<32x1xf32> to vector<32x128xf32>
    %31 = arith.addf %28, %30 : vector<32x128xf32>
    %32 = arith.truncf %31 : vector<32x128xf32> to vector<32x128xbf16>
    %33 = arith.negf %32 : vector<32x128xbf16>
    %34 = math.exp %33 : vector<32x128xbf16>
    %cst_14 = arith.constant 1.000000e+00 : bf16
    %35 = vector.broadcast %cst_14 : bf16 to vector<32x128xbf16>
    %36 = arith.addf %35, %34 : vector<32x128xbf16>
    %37 = arith.divf %35, %36 : vector<32x128xbf16>
    %38 = arith.mulf %32, %37 : vector<32x128xbf16>
    %c0_15 = arith.constant 0 : index
    %c0_16 = arith.constant 0 : index
    %39 = vector.load %arg7[%c0_15, %c0_16] : memref<32x32xbf16, #tpu.memory_space<vmem>>, vector<32x32xbf16>
    %cst_17 = arith.constant dense<0.000000e+00> : vector<32x128xf32>
    %40 = tpu.matmul %39, %38, %cst_17 {dimension_numbers = #tpu.dot_dimension_numbers<[1], [0], [0], [1], [0, 0, 1, 1], [], []>} : vector<32x32xbf16>, vector<32x128xbf16>, vector<32x128xf32> -> vector<32x128xf32>
    %c0_18 = arith.constant 0 : index
    %c0_19 = arith.constant 0 : index
    %41 = vector.load %arg8[%c0_18, %c0_19] : memref<32x1xf32, #tpu.memory_space<vmem>>, vector<32x1xf32>
    %42 = vector.broadcast %41 : vector<32x1xf32> to vector<32x128xf32>
    %43 = arith.addf %40, %42 : vector<32x128xf32>
    %c0_20 = arith.constant 0 : index
    %c0_21 = arith.constant 0 : index
    %44 = vector.load %arg9[%c0_20, %c0_21] : memref<32x128xf32, #tpu.memory_space<vmem>>, vector<32x128xf32>
    tpu.vector_store %arg9[%c0_20, %c0_21], %43 {strides = array<i32>} : memref<32x128xf32, #tpu.memory_space<vmem>>, vector<32x128xf32>,
    return
  }
  func.func @transform_0(%arg0: i32) -> (i32, i32) {
    %c0_i32 = arith.constant 0 : i32
    %c0_i32_0 = arith.constant 0 : i32
    return %c0_i32, %arg0 : i32, i32
  }
  func.func @transform_1(%arg0: i32) -> (i32, i32) {
    %c0_i32 = arith.constant 0 : i32
    %c0_i32_0 = arith.constant 0 : i32
    %c0_i32_1 = arith.constant 0 : i32
    return %c0_i32, %c0_i32_0 : i32, i32
  }
  func.func @transform_2(%arg0: i32) -> (i32, i32) {
    %c0_i32 = arith.constant 0 : i32
    %c0_i32_0 = arith.constant 0 : i32
    %c0_i32_1 = arith.constant 0 : i32
    return %c0_i32, %c0_i32_0 : i32, i32
  }
  func.func @transform_3(%arg0: i32) -> (i32, i32) {
    %c0_i32 = arith.constant 0 : i32
    %c0_i32_0 = arith.constant 0 : i32
    %c0_i32_1 = arith.constant 0 : i32
    return %c0_i32, %c0_i32_0 : i32, i32
  }
  func.func @transform_4(%arg0: i32) -> (i32, i32) {
    %c0_i32 = arith.constant 0 : i32
    %c0_i32_0 = arith.constant 0 : i32
    %c0_i32_1 = arith.constant 0 : i32
    return %c0_i32, %c0_i32_0 : i32, i32
  }
  func.func @transform_5(%arg0: i32) -> (i32, i32) {
    %c0_i32 = arith.constant 0 : i32
    %c0_i32_0 = arith.constant 0 : i32
    %c0_i32_1 = arith.constant 0 : i32
    return %c0_i32, %c0_i32_0 : i32, i32
  }
  func.func @transform_6(%arg0: i32) -> (i32, i32) {
    %c0_i32 = arith.constant 0 : i32
    %c0_i32_0 = arith.constant 0 : i32
    %c0_i32_1 = arith.constant 0 : i32
    return %c0_i32, %c0_i32_0 : i32, i32
  }
  func.func @transform_7(%arg0: i32) -> (i32, i32) {
    %c0_i32 = arith.constant 0 : i32
    %c0_i32_0 = arith.constant 0 : i32
    %c0_i32_1 = arith.constant 0 : i32
    return %c0_i32, %c0_i32_0 : i32, i32
  }
  func.func @transform_8(%arg0: i32) -> (i32, i32) {
    %c0_i32 = arith.constant 0 : i32
    %c0_i32_0 = arith.constant 0 : i32
    return %c0_i32, %arg0 : i32, i32
  }
}

</mosaic_0001>

<llo_original>
// kernel: tpu_custom_call.1
$region0: #{tpu_custom_call.1}
  #allocation0 [shape = 'u32[]', space=smem, size = 0x4, offset = 0x4, fixed_abs, tag = 'smem constant byte address 0x4 - core index']
  #allocation1 [shape = 'u32[144,128]{1,0:T(1,128)}', space=vmem, size = 0x12000, scoped, tag = 'internal scratch']
  %s0 = inlined_call_operand.vmem [shape: f32[2,256], index: 0, kind: input, shape index: {}]
  %s1 = inlined_call_operand.vmem [shape: f32[8,1], index: 1, kind: input, shape index: {}]
  %s2 = inlined_call_operand.vmem [shape: bf16[32,32], index: 2, kind: input, shape index: {}]
  %s3 = inlined_call_operand.vmem [shape: f32[32,1], index: 3, kind: input, shape index: {}]
  %s4 = inlined_call_operand.vmem [shape: bf16[32,32], index: 4, kind: input, shape index: {}]
  %s5 = inlined_call_operand.vmem [shape: f32[32,1], index: 5, kind: input, shape index: {}]
  %s6 = inlined_call_operand.vmem [shape: bf16[32,32], index: 6, kind: input, shape index: {}]
  %s7 = inlined_call_operand.vmem [shape: f32[32,1], index: 7, kind: input, shape index: {}]
  %s8 = inlined_call_operand.hbm [shape: f32[32,256], index: 8, kind: output, shape index: {}]
  %s9 = sld [smem:[#allocation0]]
  $region65: #{tpu_custom_call.1} parent=0
    _
  %s11 = ssub.s32 1, %s9
  %s12 = scalar_select 0, %s11, %s9
  $region1: #{tpu_custom_call.1} parent=0
    #allocation2 [shape = 'u8[32768]{0}', space=vmem, size = 0x8000, scoped, tag = 'output window, operand 0']
    #allocation3 [shape = 's32[2]{0}', space=sflag, size = 0x8, scoped, tag = 'scoped memory for tpu_custom_call.1']
    %13 = vsyncpa [#allocation3], 0
    %s14 = scalar_lea.sflag [#allocation3], 1
    %15 = vsyncpa %s14, 0
    loop: start=0, step=1, limit=4
    $region2: #{tpu_custom_call.1} parent=1 // loop_pre_header
      _
    $region3: #{tpu_custom_call.1} parent=1 // loop_header
      %s17 = sphi 0, %s21
      %p18 = scmp.ge.s32.totalorder %s17, 4
      %s27 = sphi 0, %s29
      %s30 = sphi 0, %s27
      %s31 = sphi 0, %s30
      %s47 = sphi 0, %s31
      %s51 = sphi 0, %s51
      %s53 = sphi 0, %s51
      %s54 = sphi 0, %s53
      %s68 = sphi 0, %s54
      %s72 = sphi 0, %s72
      %s74 = sphi 0, %s72
      %s75 = sphi 0, %s74
      %s89 = sphi 0, %s75
      %s93 = sphi 0, %s93
      %s95 = sphi 0, %s93
      %s96 = sphi 0, %s95
      %s110 = sphi 0, %s96
      %s114 = sphi 0, %s114
      %s116 = sphi 0, %s114
      %s117 = sphi 0, %s116
      %s131 = sphi 0, %s117
      %s135 = sphi 0, %s135
      %s137 = sphi 0, %s135
      %s138 = sphi 0, %s137
      %s152 = sphi 0, %s138
      %s156 = sphi 0, %s156
      %s158 = sphi 0, %s156
      %s159 = sphi 0, %s158
      %s173 = sphi 0, %s159
      %s177 = sphi 0, %s177
      %s179 = sphi 0, %s177
      %s180 = sphi 0, %s179
      %s194 = sphi 0, %s180
      %s200 = sphi 0, %s202
      %s203 = sphi 0, %s200
      %s204 = sphi 0, %s203
      %s220 = sphi 0, %s204
    $region4: #{tpu_custom_call.1} parent=1 // loop_header_branch
      %20 = sbr.rel (%p18) target = $region8
    $region5: #{tpu_custom_call.1} parent=1 // loop_body
      %s22 = ssub.s32 %s17, 1
      %s23 = ssub.s32 %s17, 2
      %s24 = sadd.s32 %s17, 1
      %s25 = ssub.s32 %s17, %s24
      %p26 = scmp.eq.s32.totalorder %s25, 0
      %s28 = sadd.s32 %s27, 1
      %s29 = scalar_select %p26, %s27, %s28
      %p32 = pneg %p26
      %p33 = scmp.eq.s32.totalorder %s17, 1
      %p34 = por %p32, %p33
      %p35 = scmp.ne.s32.totalorder %s27, %s30
      %p36 = scmp.eq.s32.totalorder %s17, 0
      %p37 = por %p35, %p36
      %p38 = scmp.ne.s32.totalorder %s27, %s30
      %p39 = scmp.eq.s32.totalorder %s22, 1
      %p40 = por %p38, %p39
      %p41 = scmp.ne.s32.totalorder %s30, %s31
      %p42 = scmp.eq.s32.totalorder %s22, 0
      %p43 = por %p41, %p42
      %p44 = scmp.ne.s32.totalorder %s30, %s31
      %p45 = scmp.eq.s32.totalorder %s23, 1
      %p46 = por %p44, %p45
      %p48 = scmp.ne.s32.totalorder %s31, %s47
      %p49 = scmp.eq.s32.totalorder %s23, 0
      %p50 = por %p48, %p49
      %s52 = sadd.s32 %s51, 1
      %p55 = scmp.eq.s32.totalorder %s17, 1
      %p56 = scmp.ne.s32.totalorder %s51, %s53
      %p57 = scmp.eq.s32.totalorder %s17, 0
      %p58 = por %p56, %p57
      %p59 = scmp.ne.s32.totalorder %s51, %s53
      %p60 = scmp.eq.s32.totalorder %s22, 1
      %p61 = por %p59, %p60
      %p62 = scmp.ne.s32.totalorder %s53, %s54
      %p63 = scmp.eq.s32.totalorder %s22, 0
      %p64 = por %p62, %p63
      %p65 = scmp.ne.s32.totalorder %s53, %s54
      %p66 = scmp.eq.s32.totalorder %s23, 1
      %p67 = por %p65, %p66
      %p69 = scmp.ne.s32.totalorder %s54, %s68
      %p70 = scmp.eq.s32.totalorder %s23, 0
      %p71 = por %p69, %p70
      %s73 = sadd.s32 %s72, 1
      %p76 = scmp.eq.s32.totalorder %s17, 1
      %p77 = scmp.ne.s32.totalorder %s72, %s74
      %p78 = scmp.eq.s32.totalorder %s17, 0
      %p79 = por %p77, %p78
      %p80 = scmp.ne.s32.totalorder %s72, %s74
      %p81 = scmp.eq.s32.totalorder %s22, 1
      %p82 = por %p80, %p81
      %p83 = scmp.ne.s32.totalorder %s74, %s75
      %p84 = scmp.eq.s32.totalorder %s22, 0
      %p85 = por %p83, %p84
      %p86 = scmp.ne.s32.totalorder %s74, %s75
      %p87 = scmp.eq.s32.totalorder %s23, 1
      %p88 = por %p86, %p87
      %p90 = scmp.ne.s32.totalorder %s75, %s89
      %p91 = scmp.eq.s32.totalorder %s23, 0
      %p92 = por %p90, %p91
      %s94 = sadd.s32 %s93, 1
      %p97 = scmp.eq.s32.totalorder %s17, 1
      %p98 = scmp.ne.s32.totalorder %s93, %s95
      %p99 = scmp.eq.s32.totalorder %s17, 0
      %p100 = por %p98, %p99
      %p101 = scmp.ne.s32.totalorder %s93, %s95
      %p102 = scmp.eq.s32.totalorder %s22, 1
      %p103 = por %p101, %p102
      %p104 = scmp.ne.s32.totalorder %s95, %s96
      %p105 = scmp.eq.s32.totalorder %s22, 0
      %p106 = por %p104, %p105
      %p107 = scmp.ne.s32.totalorder %s95, %s96
      %p108 = scmp.eq.s32.totalorder %s23, 1
      %p109 = por %p107, %p108
      %p111 = scmp.ne.s32.totalorder %s96, %s110
      %p112 = scmp.eq.s32.totalorder %s23, 0
      %p113 = por %p111, %p112
      %s115 = sadd.s32 %s114, 1
      %p118 = scmp.eq.s32.totalorder %s17, 1
      %p119 = scmp.ne.s32.totalorder %s114, %s116
      %p120 = scmp.eq.s32.totalorder %s17, 0
      %p121 = por %p119, %p120
      %p122 = scmp.ne.s32.totalorder %s114, %s116
      %p123 = scmp.eq.s32.totalorder %s22, 1
      %p124 = por %p122, %p123
      %p125 = scmp.ne.s32.totalorder %s116, %s117
      %p126 = scmp.eq.s32.totalorder %s22, 0
      %p127 = por %p125, %p126
      %p128 = scmp.ne.s32.totalorder %s116, %s117
      %p129 = scmp.eq.s32.totalorder %s23, 1
      %p130 = por %p128, %p129
      %p132 = scmp.ne.s32.totalorder %s117, %s131
      %p133 = scmp.eq.s32.totalorder %s23, 0
      %p134 = por %p132, %p133
      %s136 = sadd.s32 %s135, 1
      %p139 = scmp.eq.s32.totalorder %s17, 1
      %p140 = scmp.ne.s32.totalorder %s135, %s137
      %p141 = scmp.eq.s32.totalorder %s17, 0
      %p142 = por %p140, %p141
      %p143 = scmp.ne.s32.totalorder %s135, %s137
      %p144 = scmp.eq.s32.totalorder %s22, 1
      %p145 = por %p143, %p144
      %p146 = scmp.ne.s32.totalorder %s137, %s138
      %p147 = scmp.eq.s32.totalorder %s22, 0
      %p148 = por %p146, %p147
      %p149 = scmp.ne.s32.totalorder %s137, %s138
      %p150 = scmp.eq.s32.totalorder %s23, 1
      %p151 = por %p149, %p150
      %p153 = scmp.ne.s32.totalorder %s138, %s152
      %p154 = scmp.eq.s32.totalorder %s23, 0
      %p155 = por %p153, %p154
      %s157 = sadd.s32 %s156, 1
      %p160 = scmp.eq.s32.totalorder %s17, 1
      %p161 = scmp.ne.s32.totalorder %s156, %s158
      %p162 = scmp.eq.s32.totalorder %s17, 0
      %p163 = por %p161, %p162
      %p164 = scmp.ne.s32.totalorder %s156, %s158
      %p165 = scmp.eq.s32.totalorder %s22, 1
      %p166 = por %p164, %p165
      %p167 = scmp.ne.s32.totalorder %s158, %s159
      %p168 = scmp.eq.s32.totalorder %s22, 0
      %p169 = por %p167, %p168
      %p170 = scmp.ne.s32.totalorder %s158, %s159
      %p171 = scmp.eq.s32.totalorder %s23, 1
      %p172 = por %p170, %p171
      %p174 = scmp.ne.s32.totalorder %s159, %s173
      %p175 = scmp.eq.s32.totalorder %s23, 0
      %p176 = por %p174, %p175
      %s178 = sadd.s32 %s177, 1
      %p181 = scmp.eq.s32.totalorder %s17, 1
      %p182 = scmp.ne.s32.totalorder %s177, %s179
      %p183 = scmp.eq.s32.totalorder %s17, 0
      %p184 = por %p182, %p183
      %p185 = scmp.ne.s32.totalorder %s177, %s179
      %p186 = scmp.eq.s32.totalorder %s22, 1
      %p187 = por %p185, %p186
      %p188 = scmp.ne.s32.totalorder %s179, %s180
      %p189 = scmp.eq.s32.totalorder %s22, 0
      %p190 = por %p188, %p189
      %p191 = scmp.ne.s32.totalorder %s179, %s180
      %p192 = scmp.eq.s32.totalorder %s23, 1
      %p193 = por %p191, %p192
      %p195 = scmp.ne.s32.totalorder %s180, %s194
      %p196 = scmp.eq.s32.totalorder %s23, 0
      %p197 = por %p195, %p196
      %s198 = ssub.s32 %s17, %s24
      %p199 = scmp.eq.s32.totalorder %s198, 0
      %s201 = sadd.s32 %s200, 1
      %s202 = scalar_select %p199, %s200, %s201
      %p205 = pneg %p199
      %p206 = scmp.eq.s32.totalorder %s17, 1
      %p207 = por %p205, %p206
      %p208 = scmp.ne.s32.totalorder %s200, %s203
      %p209 = scmp.eq.s32.totalorder %s17, 0
      %p210 = por %p208, %p209
      %p211 = scmp.ne.s32.totalorder %s200, %s203
      %p212 = scmp.eq.s32.totalorder %s22, 1
      %p213 = por %p211, %p212
      %p214 = scmp.ne.s32.totalorder %s203, %s204
      %p215 = scmp.eq.s32.totalorder %s22, 0
      %p216 = por %p214, %p215
      %p217 = scmp.ne.s32.totalorder %s203, %s204
      %p218 = scmp.eq.s32.totalorder %s23, 1
      %p219 = por %p217, %p218
      %p221 = scmp.ne.s32.totalorder %s204, %s220
      %p222 = scmp.eq.s32.totalorder %s23, 0
      %p223 = por %p221, %p222
      %p224 = scmp.le.s32.totalorder 1, %s17
      %p225 = scmp.lt.s32.totalorder %s17, 3
      %p226 = pnand %p224, %p225
      %p227 = pneg %p226
      // Predicated region
      $region9: #{tpu_custom_call.1} parent=5 // pred_check
        _
      $region10: #{tpu_custom_call.1} parent=5 // pred_check_branch
        %229 = sbr.rel (%p226) target = $region12
      $region11: #{tpu_custom_call.1} parent=5 // pred_region
        %s230 = ssub.s32 %s17, 1
        // Predicated region
        $region13: #{tpu_custom_call.1} parent=11 // pred_check
          %p231 = pneg %p64
        $region14: #{tpu_custom_call.1} parent=11 // pred_check_branch
          %233 = sbr.rel (%p231) target = $region16
        $region15: #{tpu_custom_call.1} parent=11 // pred_region
          _
        $region16: #{tpu_custom_call.1} parent=11 // pred_fallthru
          _
        // Predicated region
        $region17: #{tpu_custom_call.1} parent=11 // pred_check
          %p234 = pneg %p85
        $region18: #{tpu_custom_call.1} parent=11 // pred_check_branch
          %236 = sbr.rel (%p234) target = $region20
        $region19: #{tpu_custom_call.1} parent=11 // pred_region
          _
        $region20: #{tpu_custom_call.1} parent=11 // pred_fallthru
          _
        // Predicated region
        $region21: #{tpu_custom_call.1} parent=11 // pred_check
          %p237 = pneg %p106
        $region22: #{tpu_custom_call.1} parent=11 // pred_check_branch
          %239 = sbr.rel (%p237) target = $region24
        $region23: #{tpu_custom_call.1} parent=11 // pred_region
          _
        $region24: #{tpu_custom_call.1} parent=11 // pred_fallthru
          _
        // Predicated region
        $region25: #{tpu_custom_call.1} parent=11 // pred_check
          %p240 = pneg %p127
        $region26: #{tpu_custom_call.1} parent=11 // pred_check_branch
          %242 = sbr.rel (%p240) target = $region28
        $region27: #{tpu_custom_call.1} parent=11 // pred_region
          _
        $region28: #{tpu_custom_call.1} parent=11 // pred_fallthru
          _
        // Predicated region
        $region29: #{tpu_custom_call.1} parent=11 // pred_check
          %p243 = pneg %p148
        $region30: #{tpu_custom_call.1} parent=11 // pred_check_branch
          %245 = sbr.rel (%p243) target = $region32
        $region31: #{tpu_custom_call.1} parent=11 // pred_region
          _
        $region32: #{tpu_custom_call.1} parent=11 // pred_fallthru
          _
        // Predicated region
        $region33: #{tpu_custom_call.1} parent=11 // pred_check
          %p246 = pneg %p169
        $region34: #{tpu_custom_call.1} parent=11 // pred_check_branch
          %248 = sbr.rel (%p246) target = $region36
        $region35: #{tpu_custom_call.1} parent=11 // pred_region
          _
        $region36: #{tpu_custom_call.1} parent=11 // pred_fallthru
          _
        // Predicated region
        $region37: #{tpu_custom_call.1} parent=11 // pred_check
          %p249 = pneg %p190
        $region38: #{tpu_custom_call.1} parent=11 // pred_check_branch
          %251 = sbr.rel (%p249) target = $region40
        $region39: #{tpu_custom_call.1} parent=11 // pred_region
          _
        $region40: #{tpu_custom_call.1} parent=11 // pred_fallthru
          _
      $region12: #{tpu_custom_call.1} parent=5 // pred_fallthru
        _
      %p252 = scmp.lt.s32.totalorder %s17, 2
      // Predicated region
      $region41: #{tpu_custom_call.1} parent=5 // pred_check
        %p253 = pneg %p252
      $region42: #{tpu_custom_call.1} parent=5 // pred_check_branch
        %255 = sbr.rel (%p253) target = $region44
      $region43: #{tpu_custom_call.1} parent=5 // pred_region
        // Predicated region
        $region45: #{tpu_custom_call.1} parent=43 // pred_check
          %p256 = pneg %p37
        $region46: #{tpu_custom_call.1} parent=43 // pred_check_branch
          %258 = sbr.rel (%p256) target = $region48
        $region47: #{tpu_custom_call.1} parent=43 // pred_region
          %p259 = scmp.lt.s32.totalorder %s17, 1
          %s260 = scalar_select %p259, %s17, 1
          %s261 = smul.addr %s260, 2
          %s262 = scalar_lea.vmem %s0, %s261
        $region48: #{tpu_custom_call.1} parent=43 // pred_fallthru
          _
      $region44: #{tpu_custom_call.1} parent=5 // pred_fallthru
        _
      %p263 = scmp.le.s32.totalorder 1, %s17
      %p264 = scmp.lt.s32.totalorder %s17, 3
      %p265 = pnand %p263, %p264
      %p266 = pneg %p265
      // Predicated region
      $region49: #{tpu_custom_call.1} parent=5 // pred_check
        _
      $region50: #{tpu_custom_call.1} parent=5 // pred_check_branch
        %268 = sbr.rel (%p265) target = $region52
      $region51: #{tpu_custom_call.1} parent=5 // pred_region
        %s269 = ssub.s32 %s17, 1
        %p270 = scmp.lt.s32.totalorder %s22, 1
        %s271 = scalar_select %p270, %s22, 1
        %s272 = smul.addr %s271, 2
        %s273 = scalar_lea.vmem %s0, %s272
        %p274 = pneg %p43
        %p275 = pneg %p40
        %p276 = pneg %p64
        %p277 = pneg %p61
        %p278 = pneg %p85
        %p279 = pneg %p82
        %p280 = pneg %p106
        %p281 = pneg %p103
        %p282 = pneg %p127
        %p283 = pneg %p124
        %p284 = pneg %p148
        %p285 = pneg %p145
        %p286 = pneg %p169
        %p287 = pneg %p166
        %p288 = pneg %p190
        %p289 = pneg %p187
        %p290 = pneg %p216
        %p291 = pneg %p213
        %s292 = sand.u32 %s203, 1
        %s293 = scalar_lea.sflag [#allocation3], %s292
        %s294 = sand.u32 %s203, 1
        %s295 = smul.addr %s294, 32
        %s296 = scalar_lea.vmem [#allocation2], %s295
        %p297 = scmp.lt.s32.totalorder %s22, 1
        %s298 = scalar_select %p297, %s22, 1
        %s299 = smul.addr %s298, 2
        %s300 = scalar_lea.vmem %s0, %s299
        %v303 = vld [vmem:[%s1] sm:$0xff]
        %v304 = vld [vmem:[%s300] sm:$0x1]
        %306 = vset.pattern.permute.xlu0 0
        %307 = vperm.xlu0 %306, %v303
        %v308 = vpop.permute.xlu0 %307
        %v310 = vlaneseq
        %v311 = vshrl.u32 %v310, 7
        %v312 = vsub.s32 0, %v311
        %v313 = vrot.slane %v304, %v312
        %v314 = vmul.f32 %v308, %v313
        %v315 = vld [vmem:[%s300 + $0x1] sm:$0x1]
        %v316 = vlaneseq
        %v317 = vshrl.u32 %v316, 7
        %v318 = vsub.s32 0, %v317
        %v319 = vrot.slane %v315, %v318
        %v320 = vmul.f32 %v308, %v319
        %v321 = vand.u32 2147483647, %v314
        %vm322 = vcmp.le.f32.partialorder %v321, 0.7853982
        %vm323 = vcmp.lt.s32.totalorder %v314, 0
        %v324 = vand.u32 %v314, 2139095040
        %v325 = vshrl.u32 %v324, 23
        %v326 = vsub.s32 %v325, 127
        %v327 = vand.u32 2147483647, %v314
        %v328 = vand.u32 %v327, 8388607
        %v329 = vor.u32 %v328, 8388608
        %v330 = vsub.s32 0, %v329
        %v331 = vadd.s32 %v326, 1
        %vm332 = vcmp.gt.s32.totalorder %v331, 0
        %v333 = vsel %vm332, %v331, 0
        %v334 = vshrl.u32 %v333, 5
        %v335 = vand.u32 %v333, 31
        %v336 = vsub.s32 32, %v335
        %v337 = vshrl.u32 683565275, %v336
        %v338 = vshll.u32 683565275, %v335
        %v339 = vshrl.u32 2475754826, %v336
        %v340 = vor.u32 %v338, %v339
        %v341 = vshll.u32 2475754826, %v335
        %v342 = vshrl.u32 2131351028, %v336
        %v343 = vor.u32 %v341, %v342
        %v344 = vshll.u32 2131351028, %v335
        %v345 = vshrl.u32 2102212464, %v336
        %v346 = vor.u32 %v344, %v345
        %v347 = vshll.u32 2102212464, %v335
        %v348 = vshrl.u32 920167782, %v336
        %v349 = vor.u32 %v347, %v348
        %v350 = vshll.u32 920167782, %v335
        %v351 = vshrl.u32 1326507024, %v336
        %v352 = vor.u32 %v350, %v351
        %vm353 = vcmp.lt.s32.totalorder %v334, 1
        %vm354 = vcmp.lt.s32.totalorder %v334, 2
        %vm355 = vcmp.lt.s32.totalorder %v334, 3
        %vm356 = vcmp.lt.s32.totalorder %v334, 4
        %v357 = vsel %vm353, %v337, %v340
        %v358 = vsel %vm356, %v346, 2102212464
        %v359 = vsel %vm355, %v343, %v358
        %v360 = vsel %vm354, %v357, %v359
        %v361 = vsel %vm353, %v340, %v343
        %v362 = vsel %vm356, %v349, 920167782
        %v363 = vsel %vm355, %v346, %v362
        %v364 = vsel %vm354, %v361, %v363
        %v365 = vsel %vm353, %v343, %v346
        %v366 = vsel %vm356, %v352, 1326507024
        %v367 = vsel %vm355, %v349, %v366
        %v368 = vsel %vm354, %v365, %v367
        %v369 = vshll.u32 %v329, 8
        %v370 = vmul.u32.u64.compose %v369, %v368
        %v371 = vextract.low.u32 %v370
        %v372 = vextract.high.u32 %v370
        %v373 = vmul.u32.u64.compose %v369, %v364
        %v374 = vextract.low.u32 %v373
        %v375 = vextract.high.u32 %v373
        %v376 = vmul.u32 %v369, %v360
        %v377 = vadd.s32 %v372, %v374
        %vm378 = vc.u32 %v372, %v374
        %v379 = vadd.s32 %v375, 1
        %v380 = vsel %vm378, %v379, %v375
        %v381 = vadd.s32 %v376, %v380
        %v382 = vadd.s32 %v381, 536870912
        %v383 = vshrl.u32 %v382, 30
        %v384 = vshll.u32 %v383, 30
        %v385 = vsub.s32 %v381, %v384
        %vm386 = vcmp.lt.s32.totalorder %v385, 0
        %v387 = vsub.s32 0, %v385
        %v388 = vsel %vm386, %v387, %v385
        %v389 = vclz %v388
        %v390 = vsub.s32 %v389, 2
        %vm391 = vcmp.gt.s32.totalorder 0, %v390
        %v392 = vsel %vm391, 0, %v390
        %v393 = vsub.s32 32, %v392
        %v394 = vshll.u32 %v385, %v392
        %v395 = vshrl.u32 %v377, %v393
        %v396 = vor.u32 %v394, %v395
        %v397 = vsub.s32 4294967266, %v392
        %v398 = vadd.s32 %v397, 127
        %v399 = vshll.u32 %v398, 23
        %v400 = vor.u32 4788187, %v399
        %v401 = vand.u32 2147483647, %v400
        %v403 = vcvt.s32.f32 %v396
        %v404 = vmul.f32 %v403, %v401
        %v405 = vxor.u32 %v404, 2147483648
        %v406 = vsel %vm323, %v405, %v404
        %v407 = vsub.s32 4, %v383
        %v408 = vsel %vm323, %v407, %v383
        %v409 = vsel %vm322, %v314, %v406
        %v410 = vsel %vm322, 0, %v408
        %v411 = vcosq.f32.pop %v409
        %v412 = vsinq.f32.pop %v409
        %vm413 = vweird.f32 %v314
        %v414 = vadd.s32 %v410, 3
        %v415 = vand.u32 %v414, 3
        %vm416 = vcmp.lt.s32.totalorder %v415, 2
        %vm417 = vcmp.eq.s32.totalorder %v415, 0
        %v418 = vxor.u32 %v412, 2147483648
        %v419 = vsel %vm417, %v411, %v418
        %vm420 = vcmp.eq.s32.totalorder %v415, 2
        %v421 = vxor.u32 %v411, 2147483648
        %v422 = vsel %vm420, %v421, %v412
        %v423 = vsel %vm416, %v419, %v422
        %v424 = vsel %vm413, nan, %v423
        %v425 = vand.u32 2147483647, %v314
        %vm426 = vcmp.le.f32.partialorder %v425, 0.7853982
        %vm427 = vcmp.lt.s32.totalorder %v314, 0
        %v428 = vand.u32 %v314, 2139095040
        %v429 = vshrl.u32 %v428, 23
        %v430 = vsub.s32 %v429, 127
        %v431 = vand.u32 2147483647, %v314
        %v432 = vand.u32 %v431, 8388607
        %v433 = vor.u32 %v432, 8388608
        %v434 = vsub.s32 0, %v433
        %v435 = vadd.s32 %v430, 1
        %vm436 = vcmp.gt.s32.totalorder %v435, 0
        %v437 = vsel %vm436, %v435, 0
        %v438 = vshrl.u32 %v437, 5
        %v439 = vand.u32 %v437, 31
        %v440 = vsub.s32 32, %v439
        %v441 = vshrl.u32 683565275, %v440
        %v442 = vshll.u32 683565275, %v439
        %v443 = vshrl.u32 2475754826, %v440
        %v444 = vor.u32 %v442, %v443
        %v445 = vshll.u32 2475754826, %v439
        %v446 = vshrl.u32 2131351028, %v440
        %v447 = vor.u32 %v445, %v446
        %v448 = vshll.u32 2131351028, %v439
        %v449 = vshrl.u32 2102212464, %v440
        %v450 = vor.u32 %v448, %v449
        %v451 = vshll.u32 2102212464, %v439
        %v452 = vshrl.u32 920167782, %v440
        %v453 = vor.u32 %v451, %v452
        %v454 = vshll.u32 920167782, %v439
        %v455 = vshrl.u32 1326507024, %v440
        %v456 = vor.u32 %v454, %v455
        %vm457 = vcmp.lt.s32.totalorder %v438, 1
        %vm458 = vcmp.lt.s32.totalorder %v438, 2
        %vm459 = vcmp.lt.s32.totalorder %v438, 3
        %vm460 = vcmp.lt.s32.totalorder %v438, 4
        %v461 = vsel %vm457, %v441, %v444
        %v462 = vsel %vm460, %v450, 2102212464
        %v463 = vsel %vm459, %v447, %v462
        %v464 = vsel %vm458, %v461, %v463
        %v465 = vsel %vm457, %v444, %v447
        %v466 = vsel %vm460, %v453, 920167782
        %v467 = vsel %vm459, %v450, %v466
        %v468 = vsel %vm458, %v465, %v467
        %v469 = vsel %vm457, %v447, %v450
        %v470 = vsel %vm460, %v456, 1326507024
        %v471 = vsel %vm459, %v453, %v470
        %v472 = vsel %vm458, %v469, %v471
        %v473 = vshll.u32 %v433, 8
        %v474 = vmul.u32.u64.compose %v473, %v472
        %v475 = vextract.low.u32 %v474
        %v476 = vextract.high.u32 %v474
        %v477 = vmul.u32.u64.compose %v473, %v468
        %v478 = vextract.low.u32 %v477
        %v479 = vextract.high.u32 %v477
        %v480 = vmul.u32 %v473, %v464
        %v481 = vadd.s32 %v476, %v478
        %vm482 = vc.u32 %v476, %v478
        %v483 = vadd.s32 %v479, 1
        %v484 = vsel %vm482, %v483, %v479
        %v485 = vadd.s32 %v480, %v484
        %v486 = vadd.s32 %v485, 536870912
        %v487 = vshrl.u32 %v486, 30
        %v488 = vshll.u32 %v487, 30
        %v489 = vsub.s32 %v485, %v488
        %vm490 = vcmp.lt.s32.totalorder %v489, 0
        %v491 = vsub.s32 0, %v489
        %v492 = vsel %vm490, %v491, %v489
        %v493 = vclz %v492
        %v494 = vsub.s32 %v493, 2
        %vm495 = vcmp.gt.s32.totalorder 0, %v494
        %v496 = vsel %vm495, 0, %v494
        %v497 = vsub.s32 32, %v496
        %v498 = vshll.u32 %v489, %v496
        %v499 = vshrl.u32 %v481, %v497
        %v500 = vor.u32 %v498, %v499
        %v501 = vsub.s32 4294967266, %v496
        %v502 = vadd.s32 %v501, 127
        %v503 = vshll.u32 %v502, 23
        %v504 = vor.u32 4788187, %v503
        %v505 = vand.u32 2147483647, %v504
        %v507 = vcvt.s32.f32 %v500
        %v508 = vmul.f32 %v507, %v505
        %v509 = vxor.u32 %v508, 2147483648
        %v510 = vsel %vm427, %v509, %v508
        %v511 = vsub.s32 4, %v487
        %v512 = vsel %vm427, %v511, %v487
        %v513 = vsel %vm426, %v314, %v510
        %v514 = vsel %vm426, 0, %v512
        %v515 = vcosq.f32.pop %v513
        %v516 = vsinq.f32.pop %v513
        %vm517 = vweird.f32 %v314
        %v518 = vand.u32 %v514, 3
        %vm519 = vcmp.lt.s32.totalorder %v518, 2
        %vm520 = vcmp.eq.s32.totalorder %v518, 0
        %v521 = vxor.u32 %v516, 2147483648
        %v522 = vsel %vm520, %v515, %v521
        %vm523 = vcmp.eq.s32.totalorder %v518, 2
        %v524 = vxor.u32 %v515, 2147483648
        %v525 = vsel %vm523, %v524, %v516
        %v526 = vsel %vm519, %v522, %v525
        %v527 = vsel %vm517, nan, %v526
        %v528 = vand.u32 2147483647, %v320
        %vm529 = vcmp.le.f32.partialorder %v528, 0.7853982
        %vm530 = vcmp.lt.s32.totalorder %v320, 0
        %v531 = vand.u32 %v320, 2139095040
        %v532 = vshrl.u32 %v531, 23
        %v533 = vsub.s32 %v532, 127
        %v534 = vand.u32 2147483647, %v320
        %v535 = vand.u32 %v534, 8388607
        %v536 = vor.u32 %v535, 8388608
        %v537 = vsub.s32 0, %v536
        %v538 = vadd.s32 %v533, 1
        %vm539 = vcmp.gt.s32.totalorder %v538, 0
        %v540 = vsel %vm539, %v538, 0
        %v541 = vshrl.u32 %v540, 5
        %v542 = vand.u32 %v540, 31
        %v543 = vsub.s32 32, %v542
        %v544 = vshrl.u32 683565275, %v543
        %v545 = vshll.u32 683565275, %v542
        %v546 = vshrl.u32 2475754826, %v543
        %v547 = vor.u32 %v545, %v546
        %v548 = vshll.u32 2475754826, %v542
        %v549 = vshrl.u32 2131351028, %v543
        %v550 = vor.u32 %v548, %v549
        %v551 = vshll.u32 2131351028, %v542
        %v552 = vshrl.u32 2102212464, %v543
        %v553 = vor.u32 %v551, %v552
        %v554 = vshll.u32 2102212464, %v542
        %v555 = vshrl.u32 920167782, %v543
        %v556 = vor.u32 %v554, %v555
        %v557 = vshll.u32 920167782, %v542
        %v558 = vshrl.u32 1326507024, %v543
        %v559 = vor.u32 %v557, %v558
        %vm560 = vcmp.lt.s32.totalorder %v541, 1
        %vm561 = vcmp.lt.s32.totalorder %v541, 2
        %vm562 = vcmp.lt.s32.totalorder %v541, 3
        %vm563 = vcmp.lt.s32.totalorder %v541, 4
        %v564 = vsel %vm560, %v544, %v547
        %v565 = vsel %vm563, %v553, 2102212464
        %v566 = vsel %vm562, %v550, %v565
        %v567 = vsel %vm561, %v564, %v566
        %v568 = vsel %vm560, %v547, %v550
        %v569 = vsel %vm563, %v556, 920167782
        %v570 = vsel %vm562, %v553, %v569
        %v571 = vsel %vm561, %v568, %v570
        %v572 = vsel %vm560, %v550, %v553
        %v573 = vsel %vm563, %v559, 1326507024
        %v574 = vsel %vm562, %v556, %v573
        %v575 = vsel %vm561, %v572, %v574
        %v576 = vshll.u32 %v536, 8
        %v577 = vmul.u32.u64.compose %v576, %v575
        %v578 = vextract.low.u32 %v577
        %v579 = vextract.high.u32 %v577
        %v580 = vmul.u32.u64.compose %v576, %v571
        %v581 = vextract.low.u32 %v580
        %v582 = vextract.high.u32 %v580
        %v583 = vmul.u32 %v576, %v567
        %v584 = vadd.s32 %v579, %v581
        %vm585 = vc.u32 %v579, %v581
        %v586 = vadd.s32 %v582, 1
        %v587 = vsel %vm585, %v586, %v582
        %v588 = vadd.s32 %v583, %v587
        %v589 = vadd.s32 %v588, 536870912
        %v590 = vshrl.u32 %v589, 30
        %v591 = vshll.u32 %v590, 30
        %v592 = vsub.s32 %v588, %v591
        %vm593 = vcmp.lt.s32.totalorder %v592, 0
        %v594 = vsub.s32 0, %v592
        %v595 = vsel %vm593, %v594, %v592
        %v596 = vclz %v595
        %v597 = vsub.s32 %v596, 2
        %vm598 = vcmp.gt.s32.totalorder 0, %v597
        %v599 = vsel %vm598, 0, %v597
        %v600 = vsub.s32 32, %v599
        %v601 = vshll.u32 %v592, %v599
        %v602 = vshrl.u32 %v584, %v600
        %v603 = vor.u32 %v601, %v602
        %v604 = vsub.s32 4294967266, %v599
        %v605 = vadd.s32 %v604, 127
        %v606 = vshll.u32 %v605, 23
        %v607 = vor.u32 4788187, %v606
        %v608 = vand.u32 2147483647, %v607
        %v610 = vcvt.s32.f32 %v603
        %v611 = vmul.f32 %v610, %v608
        %v612 = vxor.u32 %v611, 2147483648
        %v613 = vsel %vm530, %v612, %v611
        %v614 = vsub.s32 4, %v590
        %v615 = vsel %vm530, %v614, %v590
        %v616 = vsel %vm529, %v320, %v613
        %v617 = vsel %vm529, 0, %v615
        %v618 = vcosq.f32.pop %v616
        %v619 = vsinq.f32.pop %v616
        %vm620 = vweird.f32 %v320
        %v621 = vadd.s32 %v617, 3
        %v622 = vand.u32 %v621, 3
        %vm623 = vcmp.lt.s32.totalorder %v622, 2
        %vm624 = vcmp.eq.s32.totalorder %v622, 0
        %v625 = vxor.u32 %v619, 2147483648
        %v626 = vsel %vm624, %v618, %v625
        %vm627 = vcmp.eq.s32.totalorder %v622, 2
        %v628 = vxor.u32 %v618, 2147483648
        %v629 = vsel %vm627, %v628, %v619
        %v630 = vsel %vm623, %v626, %v629
        %v631 = vsel %vm620, nan, %v630
        %v632 = vand.u32 2147483647, %v320
        %vm633 = vcmp.le.f32.partialorder %v632, 0.7853982
        %vm634 = vcmp.lt.s32.totalorder %v320, 0
        %v635 = vand.u32 %v320, 2139095040
        %v636 = vshrl.u32 %v635, 23
        %v637 = vsub.s32 %v636, 127
        %v638 = vand.u32 2147483647, %v320
        %v639 = vand.u32 %v638, 8388607
        %v640 = vor.u32 %v639, 8388608
        %v641 = vsub.s32 0, %v640
        %v642 = vadd.s32 %v637, 1
        %vm643 = vcmp.gt.s32.totalorder %v642, 0
        %v644 = vsel %vm643, %v642, 0
        %v645 = vshrl.u32 %v644, 5
        %v646 = vand.u32 %v644, 31
        %v647 = vsub.s32 32, %v646
        %v648 = vshrl.u32 683565275, %v647
        %v649 = vshll.u32 683565275, %v646
        %v650 = vshrl.u32 2475754826, %v647
        %v651 = vor.u32 %v649, %v650
        %v652 = vshll.u32 2475754826, %v646
        %v653 = vshrl.u32 2131351028, %v647
        %v654 = vor.u32 %v652, %v653
        %v655 = vshll.u32 2131351028, %v646
        %v656 = vshrl.u32 2102212464, %v647
        %v657 = vor.u32 %v655, %v656
        %v658 = vshll.u32 2102212464, %v646
        %v659 = vshrl.u32 920167782, %v647
        %v660 = vor.u32 %v658, %v659
        %v661 = vshll.u32 920167782, %v646
        %v662 = vshrl.u32 1326507024, %v647
        %v663 = vor.u32 %v661, %v662
        %vm664 = vcmp.lt.s32.totalorder %v645, 1
        %vm665 = vcmp.lt.s32.totalorder %v645, 2
        %vm666 = vcmp.lt.s32.totalorder %v645, 3
        %vm667 = vcmp.lt.s32.totalorder %v645, 4
        %v668 = vsel %vm664, %v648, %v651
        %v669 = vsel %vm667, %v657, 2102212464
        %v670 = vsel %vm666, %v654, %v669
        %v671 = vsel %vm665, %v668, %v670
        %v672 = vsel %vm664, %v651, %v654
        %v673 = vsel %vm667, %v660, 920167782
        %v674 = vsel %vm666, %v657, %v673
        %v675 = vsel %vm665, %v672, %v674
        %v676 = vsel %vm664, %v654, %v657
        %v677 = vsel %vm667, %v663, 1326507024
        %v678 = vsel %vm666, %v660, %v677
        %v679 = vsel %vm665, %v676, %v678
        %v680 = vshll.u32 %v640, 8
        %v681 = vmul.u32.u64.compose %v680, %v679
        %v682 = vextract.low.u32 %v681
        %v683 = vextract.high.u32 %v681
        %v684 = vmul.u32.u64.compose %v680, %v675
        %v685 = vextract.low.u32 %v684
        %v686 = vextract.high.u32 %v684
        %v687 = vmul.u32 %v680, %v671
        %v688 = vadd.s32 %v683, %v685
        %vm689 = vc.u32 %v683, %v685
        %v690 = vadd.s32 %v686, 1
        %v691 = vsel %vm689, %v690, %v686
        %v692 = vadd.s32 %v687, %v691
        %v693 = vadd.s32 %v692, 536870912
        %v694 = vshrl.u32 %v693, 30
        %v695 = vshll.u32 %v694, 30
        %v696 = vsub.s32 %v692, %v695
        %vm697 = vcmp.lt.s32.totalorder %v696, 0
        %v698 = vsub.s32 0, %v696
        %v699 = vsel %vm697, %v698, %v696
        %v700 = vclz %v699
        %v701 = vsub.s32 %v700, 2
        %vm702 = vcmp.gt.s32.totalorder 0, %v701
        %v703 = vsel %vm702, 0, %v701
        %v704 = vsub.s32 32, %v703
        %v705 = vshll.u32 %v696, %v703
        %v706 = vshrl.u32 %v688, %v704
        %v707 = vor.u32 %v705, %v706
        %v708 = vsub.s32 4294967266, %v703
        %v709 = vadd.s32 %v708, 127
        %v710 = vshll.u32 %v709, 23
        %v711 = vor.u32 4788187, %v710
        %v712 = vand.u32 2147483647, %v711
        %v714 = vcvt.s32.f32 %v707
        %v715 = vmul.f32 %v714, %v712
        %v716 = vxor.u32 %v715, 2147483648
        %v717 = vsel %vm634, %v716, %v715
        %v718 = vsub.s32 4, %v694
        %v719 = vsel %vm634, %v718, %v694
        %v720 = vsel %vm633, %v320, %v717
        %v721 = vsel %vm633, 0, %v719
        %v722 = vcosq.f32.pop %v720
        %v723 = vsinq.f32.pop %v720
        %vm724 = vweird.f32 %v320
        %v725 = vand.u32 %v721, 3
        %vm726 = vcmp.lt.s32.totalorder %v725, 2
        %vm727 = vcmp.eq.s32.totalorder %v725, 0
        %v728 = vxor.u32 %v723, 2147483648
        %v729 = vsel %vm727, %v722, %v728
        %vm730 = vcmp.eq.s32.totalorder %v725, 2
        %v731 = vxor.u32 %v722, 2147483648
        %v732 = vsel %vm730, %v731, %v723
        %v733 = vsel %vm726, %v729, %v732
        %v734 = vsel %vm724, nan, %v733
        %v735 = vpack.c.bf16 %v527, %v424
        %v736 = vpack.c.bf16 %v734, %v631
        %v737 = vld [vmem:[%s2] sm:$0xf]
        %v738 = vld [vmem:[%s2 + $0x4] sm:$0xf]
        %v739 = vld [vmem:[%s2 + $0x8] sm:$0xf]
        %v740 = vld [vmem:[%s2 + $0xc] sm:$0xf]
        %v741 = vld [vmem:[%s3] sm:$0xff]
        %v742 = vld [vmem:[%s3 + $0x8] sm:$0xff]
        %v743 = vld [vmem:[%s3 + $0x10] sm:$0xff]
        %v744 = vld [vmem:[%s3 + $0x18] sm:$0xff]
        %746 = vset.pattern.permute.xlu0 0
        %747 = vperm.xlu0 %746, %v741
        %v748 = vpop.permute.xlu0 %747
        %751 = vset.pattern.permute.xlu0 0
        %752 = vperm.xlu0 %751, %v742
        %v753 = vpop.permute.xlu0 %752
        %756 = vset.pattern.permute.xlu0 0
        %757 = vperm.xlu0 %756, %v743
        %v758 = vpop.permute.xlu0 %757
        %761 = vset.pattern.permute.xlu0 0
        %762 = vperm.xlu0 %761, %v744
        %v763 = vpop.permute.xlu0 %762
        %v769 = vunpack.c.l.b16 %v737
        %v770 = vunpack.c.l.b16 %v738
        %v771 = vunpack.c.l.b16 %v739
        %v772 = vunpack.c.l.b16 %v740
        %v773 = vpack.c.b16 %v770, %v769
        %v774 = vpack.c.b16 %v772, %v771
        %vm775 = vcmask 261120
        %v777 = vsel %vm775, %v773, 0
        %v780 = vsel %vm775, %v774, 0
        %782 = vmatprep.subr.bf16.mxu0 0
        %783 = vmatpush1.bf16.msra.mxu0 %v735
        %784 = vmatprep.subr.bf16.mxu0 0
        %785 = vmatpush1.bf16.msra.mxu0 %v736
        %786 = vmatprep.subr.bf16.mxu0 0
        %787 = vmatpush1.bf16.msra.mxu0 0
        %788 = vmatprep.subr.bf16.mxu0 0
        %789 = vmatpush1.bf16.msra.mxu0 0
        %790 = vmatprep.subr.bf16.mxu0 0
        %791 = vmatpush1.bf16.msra.mxu0 0
        %792 = vmatprep.subr.bf16.mxu0 0
        %793 = vmatpush1.bf16.msra.mxu0 0
        %794 = vmatprep.subr.bf16.mxu0 0
        %795 = vmatpush1.bf16.msra.mxu0 0
        %796 = vmatprep.subr.bf16.mxu0 0
        %797 = vmatpush1.bf16.msra.mxu0 0
        %798 = vmatprep.subr.bf16.mxu0 0
        %799 = vmatpush1.bf16.msra.mxu0 0
        %800 = vmatprep.subr.bf16.mxu0 0
        %801 = vmatpush1.bf16.msra.mxu0 0
        %802 = vmatprep.subr.bf16.mxu0 0
        %803 = vmatpush1.bf16.msra.mxu0 0
        %804 = vmatprep.subr.bf16.mxu0 0
        %805 = vmatpush1.bf16.msra.mxu0 0
        %806 = vmatprep.subr.bf16.mxu0 0
        %807 = vmatpush1.bf16.msra.mxu0 0
        %808 = vmatprep.subr.bf16.mxu0 0
        %809 = vmatpush1.bf16.msra.mxu0 0
        %810 = vmatprep.subr.bf16.mxu0 0
        %811 = vmatpush1.bf16.msra.mxu0 0
        %812 = vmatprep.subr.bf16.mxu0 0
        %813 = vmatpush1.bf16.msra.mxu0 0
        %814 = vmatprep.mubr.bf16.mxu0 0
        %815 = vmatmul.mubr.bf16.gmra.mrb[0].mxu0 %v777
        %v816 = vpop.f32.mrb[0].mxu0
        %v817 = vadd.f32 %v748, %v816
        %v818 = vpop.f32.mrb[0].mxu0
        %v819 = vpop.f32.mrb[0].mxu0
        %v820 = vadd.f32 %v753, %v819
        %v821 = vpop.f32.mrb[0].mxu0
        %822 = vmatprep.mubr.bf16.mxu0 0
        %823 = vmatmul.mubr.bf16.gmra.mrb[0].mxu0 %v780
        %v824 = vpop.f32.mrb[0].mxu0
        %v825 = vadd.f32 %v758, %v824
        %v826 = vpop.f32.mrb[0].mxu0
        %v827 = vpop.f32.mrb[0].mxu0
        %v828 = vadd.f32 %v763, %v827
        %v829 = vpop.f32.mrb[0].mxu0
        %830 = vdwg.mxu0
        %v831 = vpack.c.bf16 %v820, %v817
        %v832 = vpack.c.bf16 %v828, %v825
        %v833 = vxor.u32 %v831, 2147516416
        %v834 = vxor.u32 %v832, 2147516416
        %v836 = vmul.bf16 %v833, 1069105081
        %v837 = vpow.bf16.pop %v836
        %v839 = vmul.bf16 %v834, 1069105081
        %v840 = vpow.bf16.pop %v839
        %v841 = vadd.bf16 %v837, 1065369472
        %v842 = vadd.bf16 %v840, 1065369472
        %v843 = vrcp.bf16.pop %v841
        %v844 = vmul.bf16 1065369472, %v843
        %v845 = vrcp.bf16.pop %v842
        %v846 = vmul.bf16 1065369472, %v845
        %v847 = vmul.bf16 %v831, %v844
        %v848 = vmul.bf16 %v832, %v846
        %v849 = vld [vmem:[%s4] sm:$0xf]
        %v850 = vld [vmem:[%s4 + $0x4] sm:$0xf]
        %v851 = vld [vmem:[%s4 + $0x8] sm:$0xf]
        %v852 = vld [vmem:[%s4 + $0xc] sm:$0xf]
        %v853 = vld [vmem:[%s5] sm:$0xff]
        %v854 = vld [vmem:[%s5 + $0x8] sm:$0xff]
        %v855 = vld [vmem:[%s5 + $0x10] sm:$0xff]
        %v856 = vld [vmem:[%s5 + $0x18] sm:$0xff]
        %858 = vset.pattern.permute.xlu0 0
        %859 = vperm.xlu0 %858, %v853
        %v860 = vpop.permute.xlu0 %859
        %863 = vset.pattern.permute.xlu0 0
        %864 = vperm.xlu0 %863, %v854
        %v865 = vpop.permute.xlu0 %864
        %868 = vset.pattern.permute.xlu0 0
        %869 = vperm.xlu0 %868, %v855
        %v870 = vpop.permute.xlu0 %869
        %873 = vset.pattern.permute.xlu0 0
        %874 = vperm.xlu0 %873, %v856
        %v875 = vpop.permute.xlu0 %874
        %v881 = vunpack.c.l.b16 %v849
        %v882 = vunpack.c.l.b16 %v850
        %v883 = vunpack.c.l.b16 %v851
        %v884 = vunpack.c.l.b16 %v852
        %v885 = vpack.c.b16 %v882, %v881
        %v886 = vpack.c.b16 %v884, %v883
        %v888 = vsel %vm775, %v885, 0
        %v891 = vsel %vm775, %v886, 0
        %893 = vmatprep.subr.bf16.mxu0 0
        %894 = vmatpush1.bf16.msra.mxu0 %v847
        %895 = vmatprep.subr.bf16.mxu0 0
        %896 = vmatpush1.bf16.msra.mxu0 %v848
        %897 = vmatprep.subr.bf16.mxu0 0
        %898 = vmatpush1.bf16.msra.mxu0 0
        %899 = vmatprep.subr.bf16.mxu0 0
        %900 = vmatpush1.bf16.msra.mxu0 0
        %901 = vmatprep.subr.bf16.mxu0 0
        %902 = vmatpush1.bf16.msra.mxu0 0
        %903 = vmatprep.subr.bf16.mxu0 0
        %904 = vmatpush1.bf16.msra.mxu0 0
        %905 = vmatprep.subr.bf16.mxu0 0
        %906 = vmatpush1.bf16.msra.mxu0 0
        %907 = vmatprep.subr.bf16.mxu0 0
        %908 = vmatpush1.bf16.msra.mxu0 0
        %909 = vmatprep.subr.bf16.mxu0 0
        %910 = vmatpush1.bf16.msra.mxu0 0
        %911 = vmatprep.subr.bf16.mxu0 0
        %912 = vmatpush1.bf16.msra.mxu0 0
        %913 = vmatprep.subr.bf16.mxu0 0
        %914 = vmatpush1.bf16.msra.mxu0 0
        %915 = vmatprep.subr.bf16.mxu0 0
        %916 = vmatpush1.bf16.msra.mxu0 0
        %917 = vmatprep.subr.bf16.mxu0 0
        %918 = vmatpush1.bf16.msra.mxu0 0
        %919 = vmatprep.subr.bf16.mxu0 0
        %920 = vmatpush1.bf16.msra.mxu0 0
        %921 = vmatprep.subr.bf16.mxu0 0
        %922 = vmatpush1.bf16.msra.mxu0 0
        %923 = vmatprep.subr.bf16.mxu0 0
        %924 = vmatpush1.bf16.msra.mxu0 0
        %925 = vmatprep.mubr.bf16.mxu0 0
        %926 = vmatmul.mubr.bf16.gmra.mrb[0].mxu0 %v888
        %v927 = vpop.f32.mrb[0].mxu0
        %v928 = vadd.f32 %v860, %v927
        %v929 = vpop.f32.mrb[0].mxu0
        %v930 = vpop.f32.mrb[0].mxu0
        %v931 = vadd.f32 %v865, %v930
        %v932 = vpop.f32.mrb[0].mxu0
        %933 = vmatprep.mubr.bf16.mxu0 0
        %934 = vmatmul.mubr.bf16.gmra.mrb[0].mxu0 %v891
        %v935 = vpop.f32.mrb[0].mxu0
        %v936 = vadd.f32 %v870, %v935
        %v937 = vpop.f32.mrb[0].mxu0
        %v938 = vpop.f32.mrb[0].mxu0
        %v939 = vadd.f32 %v875, %v938
        %v940 = vpop.f32.mrb[0].mxu0
        %941 = vdwg.mxu0
        %v942 = vpack.c.bf16 %v931, %v928
        %v943 = vpack.c.bf16 %v939, %v936
        %v944 = vxor.u32 %v942, 2147516416
        %v945 = vxor.u32 %v943, 2147516416
        %v947 = vmul.bf16 %v944, 1069105081
        %v948 = vpow.bf16.pop %v947
        %v950 = vmul.bf16 %v945, 1069105081
        %v951 = vpow.bf16.pop %v950
        %v952 = vadd.bf16 %v948, 1065369472
        %v953 = vadd.bf16 %v951, 1065369472
        %v954 = vrcp.bf16.pop %v952
        %v955 = vmul.bf16 1065369472, %v954
        %v956 = vrcp.bf16.pop %v953
        %v957 = vmul.bf16 1065369472, %v956
        %v958 = vmul.bf16 %v942, %v955
        %v959 = vmul.bf16 %v943, %v957
        %v960 = vld [vmem:[%s6] sm:$0xf]
        %v961 = vld [vmem:[%s6 + $0x4] sm:$0xf]
        %v962 = vld [vmem:[%s6 + $0x8] sm:$0xf]
        %v963 = vld [vmem:[%s6 + $0xc] sm:$0xf]
        %v964 = vld [vmem:[%s7] sm:$0xff]
        %v965 = vld [vmem:[%s7 + $0x8] sm:$0xff]
        %v966 = vld [vmem:[%s7 + $0x10] sm:$0xff]
        %v967 = vld [vmem:[%s7 + $0x18] sm:$0xff]
        %969 = vset.pattern.permute.xlu0 0
        %970 = vperm.xlu0 %969, %v964
        %v971 = vpop.permute.xlu0 %970
        %974 = vset.pattern.permute.xlu0 0
        %975 = vperm.xlu0 %974, %v965
        %v976 = vpop.permute.xlu0 %975
        %979 = vset.pattern.permute.xlu0 0
        %980 = vperm.xlu0 %979, %v966
        %v981 = vpop.permute.xlu0 %980
        %984 = vset.pattern.permute.xlu0 0
        %985 = vperm.xlu0 %984, %v967
        %v986 = vpop.permute.xlu0 %985
        %v992 = vunpack.c.l.b16 %v960
        %v993 = vunpack.c.l.b16 %v961
        %v994 = vunpack.c.l.b16 %v962
        %v995 = vunpack.c.l.b16 %v963
        %v996 = vpack.c.b16 %v993, %v992
        %v997 = vpack.c.b16 %v995, %v994
        %v999 = vsel %vm775, %v996, 0
        %v1002 = vsel %vm775, %v997, 0
        %1004 = vmatprep.subr.bf16.mxu0 0
        %1005 = vmatpush1.bf16.msra.mxu0 %v958
        %1006 = vmatprep.subr.bf16.mxu0 0
        %1007 = vmatpush1.bf16.msra.mxu0 %v959
        %1008 = vmatprep.subr.bf16.mxu0 0
        %1009 = vmatpush1.bf16.msra.mxu0 0
        %1010 = vmatprep.subr.bf16.mxu0 0
        %1011 = vmatpush1.bf16.msra.mxu0 0
        %1012 = vmatprep.subr.bf16.mxu0 0
        %1013 = vmatpush1.bf16.msra.mxu0 0
        %1014 = vmatprep.subr.bf16.mxu0 0
        %1015 = vmatpush1.bf16.msra.mxu0 0
        %1016 = vmatprep.subr.bf16.mxu0 0
        %1017 = vmatpush1.bf16.msra.mxu0 0
        %1018 = vmatprep.subr.bf16.mxu0 0
        %1019 = vmatpush1.bf16.msra.mxu0 0
        %1020 = vmatprep.subr.bf16.mxu0 0
        %1021 = vmatpush1.bf16.msra.mxu0 0
        %1022 = vmatprep.subr.bf16.mxu0 0
        %1023 = vmatpush1.bf16.msra.mxu0 0
        %1024 = vmatprep.subr.bf16.mxu0 0
        %1025 = vmatpush1.bf16.msra.mxu0 0
        %1026 = vmatprep.subr.bf16.mxu0 0
        %1027 = vmatpush1.bf16.msra.mxu0 0
        %1028 = vmatprep.subr.bf16.mxu0 0
        %1029 = vmatpush1.bf16.msra.mxu0 0
        %1030 = vmatprep.subr.bf16.mxu0 0
        %1031 = vmatpush1.bf16.msra.mxu0 0
        %1032 = vmatprep.subr.bf16.mxu0 0
        %1033 = vmatpush1.bf16.msra.mxu0 0
        %1034 = vmatprep.subr.bf16.mxu0 0
        %1035 = vmatpush1.bf16.msra.mxu0 0
        %1036 = vmatprep.mubr.bf16.mxu0 0
        %1037 = vmatmul.mubr.bf16.gmra.mrb[0].mxu0 %v999
        %v1038 = vpop.f32.mrb[0].mxu0
        %v1039 = vadd.f32 %v971, %v1038
        %v1040 = vpop.f32.mrb[0].mxu0
        %v1041 = vpop.f32.mrb[0].mxu0
        %v1042 = vadd.f32 %v976, %v1041
        %v1043 = vpop.f32.mrb[0].mxu0
        %1044 = vmatprep.mubr.bf16.mxu0 0
        %1045 = vmatmul.mubr.bf16.gmra.mrb[0].mxu0 %v1002
        %v1046 = vpop.f32.mrb[0].mxu0
        %v1047 = vadd.f32 %v981, %v1046
        %v1048 = vpop.f32.mrb[0].mxu0
        %v1049 = vpop.f32.mrb[0].mxu0
        %v1050 = vadd.f32 %v986, %v1049
        %v1051 = vpop.f32.mrb[0].mxu0
        %1052 = vdwg.mxu0
        %1053 = vst [vmem:[%s296] sm:$0xff] %v1039
        %1054 = vst [vmem:[%s296 + $0x8] sm:$0xff] %v1042
        %1055 = vst [vmem:[%s296 + $0x10] sm:$0xff] %v1047
        %1056 = vst [vmem:[%s296 + $0x18] sm:$0xff] %v1050
        %s1057 = sand.u32 %s203, 1
        %s1058 = scalar_lea.sflag [#allocation3], %s1057
        %s1059 = sand.u32 %s203, 1
        %s1060 = smul.addr %s1059, 32
        %s1061 = scalar_lea.vmem [#allocation2], %s1060
        // Predicated region
        $region53: #{tpu_custom_call.1} parent=51 // pred_check
          %p1062 = pneg %p213
        $region54: #{tpu_custom_call.1} parent=51 // pred_check_branch
          %1064 = sbr.rel (%p1062) target = $region56
        $region55: #{tpu_custom_call.1} parent=51 // pred_region
          %s1066 = ssub.s32 512, 512
          %1067 = vsyncadd %s1058, %s1066
          %s1068 = smul.addr %s22, 128
          %s1069 = scalar_lea.hbm %s8, %s1068
          %s1070 = sshll.u32 %s1061, 4
          %s1071 = int_to_ptr.vmem [resolvable:$true] %s1070
          %1076 = dma.vmem_to_hbm [thread:$0]  %s1071, 512, %s1069, %s1058, 128, 256, 8
        $region56: #{tpu_custom_call.1} parent=51 // pred_fallthru
          _
      $region52: #{tpu_custom_call.1} parent=5 // pred_fallthru
        _
      %p1077 = scmp.le.s32.totalorder 2, %s17
      // Predicated region
      $region57: #{tpu_custom_call.1} parent=5 // pred_check
        %p1078 = pneg %p1077
      $region58: #{tpu_custom_call.1} parent=5 // pred_check_branch
        %1080 = sbr.rel (%p1078) target = $region60
      $region59: #{tpu_custom_call.1} parent=5 // pred_region
        %s1081 = ssub.s32 %s17, 2
        // Predicated region
        $region61: #{tpu_custom_call.1} parent=59 // pred_check
          %p1082 = pneg %p219
        $region62: #{tpu_custom_call.1} parent=59 // pred_check_branch
          %1084 = sbr.rel (%p1082) target = $region64
        $region63: #{tpu_custom_call.1} parent=59 // pred_region
          %s1085 = sand.u32 %s204, 1
          %s1086 = scalar_lea.sflag [#allocation3], %s1085
          %s1087 = sand.u32 %s204, 1
          %s1088 = smul.addr %s1087, 32
          %s1089 = scalar_lea.vmem [#allocation2], %s1088
          %1090 = dma.done %s1086, 512
        $region64: #{tpu_custom_call.1} parent=59 // pred_fallthru
          _
      $region60: #{tpu_custom_call.1} parent=5 // pred_fallthru
        _
    $region6: #{tpu_custom_call.1} parent=1 // loop_footer
      %s21 = sadd.s32 1, %s17
    $region7: #{tpu_custom_call.1} parent=1 // loop_footer_branch
      %16 = sbr.rel target = $region3
    $region8: #{tpu_custom_call.1} parent=1 // loop_exit
      _
    %1091 = vsyncpa [#allocation3], 1
    %s1092 = scalar_lea.sflag [#allocation3], 1
    %1093 = vsyncpa %s1092, 1

</llo_original>
